<compile_context>
chip_gen: v5e
topology: v5e:2x2
jax: 0.10.0
libtpu: 0.0.40
codegen_flags: <defaults>
</compile_context>

<pallas_src>
from functools import partial

import jax
import jax.numpy as jnp
from jax import lax
from jax.experimental import pallas as pl
from jax.experimental.pallas import tpu as pltpu

BN_EPS = 1e-5
LANE = 128
SUBLANE = 8


def _round_up(x, m):
    return (x + m - 1) // m * m


def _vmem_limit_bytes(footprint_bytes):
    """Size the VMEM limit from the actual padded footprint, per-generation cap."""
    try:
        cap = int(pltpu.get_tpu_info().vmem_capacity_bytes)
    except Exception:
        cap = 64 * 1024 * 1024  # conservative (v7x per-TC VMEM)
    want = 2 * footprint_bytes + 8 * 1024 * 1024  # double-buffering + headroom
    want = max(want, 16 * 1024 * 1024)
    return int(min(want, (cap * 7) // 8))


def _make_fused_kernel(num_layers, real_batch, pad_batch):
    """Builds kernel(x_ref, w0_ref, ..., w{L-1}_ref, o_ref) for the full tower."""
    inv_b = 1.0 / float(real_batch)
    needs_mask = pad_batch != real_batch

    def kernel(*refs):
        x_ref = refs[0]
        w_refs = refs[1:1 + num_layers]
        o_ref = refs[-1]

        h = x_ref[...]  # f32 activations
        if needs_mask:
            row_ids = lax.broadcasted_iota(jnp.int32, (pad_batch, 1), 0)
            row_mask = (row_ids < real_batch).astype(jnp.float32)

        for w_ref in w_refs:
            wv = w_ref[...]
            # Linear on the MXU; operands in the weight dtype (f32 or bf16),
            # accumulation in f32.  Bias omitted: cancelled by BN mean-subtract.
            y = jnp.dot(h.astype(wv.dtype), wv,
                        preferred_element_type=jnp.float32)

            # One-pass batch statistics in f32.  Padded batch rows are exactly
            # zero, so the sums are exact; divide by the REAL batch size.
            s = jnp.sum(y, axis=0, keepdims=True)
            ssq = jnp.sum(y * y, axis=0, keepdims=True)
            mean = s * inv_b
            var = jnp.maximum(ssq * inv_b - mean * mean, 0.0)

            # Normalize + ReLU (f32 elementwise; rsqrt lands on the EUP slot).
            h = jnp.maximum((y - mean) * lax.rsqrt(var + BN_EPS), 0.0)

            if needs_mask:
                h = h * row_mask  # keep padded batch rows exactly zero

        o_ref[...] = h.astype(o_ref.dtype)

    return kernel


def init_deepnet_params(key, input_feature_num, deep_layer,
                        matmul_dtype=jnp.float32):
    """PyTorch-style nn.Linear init (uniform +/- 1/sqrt(fan_in)).

    Weights are stored BOTH unpadded (f32, for references) and pre-padded to
    lane-aligned [in, out] tiles in `matmul_dtype` (what the kernel consumes).
    Padding/casting happens once here, never in the per-call forward.
    Biases are created for fidelity with the PyTorch module but are a no-op in
    the forward pass (cancelled by BatchNorm's mean subtraction).
    """
    dims = [input_feature_num] + list(deep_layer)
    pad_dims = [_round_up(d, LANE) for d in dims]
    weights, weights_padded, biases = [], [], []
    for i in range(len(deep_layer)):
        fan_in, fan_out = dims[i], dims[i + 1]
        key, kw, kb = jax.random.split(key, 3)
        bound = float(fan_in) ** -0.5
        w = jax.random.uniform(kw, (fan_in, fan_out), jnp.float32, -bound, bound)
        b = jax.random.uniform(kb, (fan_out,), jnp.float32, -bound, bound)
        w_p = jnp.pad(w, ((0, pad_dims[i] - fan_in),
                          (0, pad_dims[i + 1] - fan_out))).astype(matmul_dtype)
        weights.append(w)
        weights_padded.append(w_p)
        biases.append(b)
    return {"weights": weights, "weights_padded": weights_padded, "biases": biases}


@partial(jax.jit, static_argnames=("out_features",))
def deepnet_forward(x, padded_weights, *, out_features):
    """Forward pass of DeepNet: one fused Pallas kernel for the whole tower.

    `padded_weights`: list of pre-padded [in_pad, out_pad] weight tiles
    (f32 or bf16).  `out_features`: real (unpadded) final feature count.
    NOTE: like PyTorch BatchNorm1d in training mode, batch size 1 is not
    meaningful (PyTorch raises; here it would emit rsqrt(eps)-scaled zeros).
    """
    batch, in_f = x.shape
    num_layers = len(padded_weights)
    pad_dims = [padded_weights[0].shape[0]] + [w.shape[1] for w in padded_weights]

    pad_b = _round_up(batch, SUBLANE)
    # Only x is padded per call (cheap); weights are already padded at init.
    x_p = jnp.pad(x.astype(jnp.float32),
                  ((0, pad_b - batch), (0, pad_dims[0] - in_f)))

    kernel = _make_fused_kernel(num_layers, batch, pad_b)

    in_specs = [pl.BlockSpec((pad_b, pad_dims[0]), lambda: (0, 0))]
    in_specs += [pl.BlockSpec(w.shape, lambda: (0, 0)) for w in padded_weights]
    out_spec = pl.BlockSpec((pad_b, pad_dims[-1]), lambda: (0, 0))

    flops = sum(2 * pad_b * pad_dims[i] * pad_dims[i + 1]
                for i in range(num_layers))
    transcendentals = sum(pad_dims[1:])  # one rsqrt per feature per layer
    w_bytes = sum(int(w.size) * w.dtype.itemsize for w in padded_weights)
    io_bytes = 4 * (pad_b * pad_dims[0] + pad_b * pad_dims[-1])
    bytes_accessed = io_bytes + w_bytes

    footprint = io_bytes + w_bytes + 2 * 4 * pad_b * max(pad_dims)

    out_padded = pl.pallas_call(
        kernel,
        out_shape=jax.ShapeDtypeStruct((pad_b, pad_dims[-1]), jnp.float32),
        in_specs=in_specs,
        out_specs=out_spec,
        cost_estimate=pl.CostEstimate(
            flops=flops,
            transcendentals=transcendentals,
            bytes_accessed=bytes_accessed,
        ),
        compiler_params=pltpu.CompilerParams(
            vmem_limit_bytes=_vmem_limit_bytes(footprint)),
    )(x_p, *padded_weights)

    return out_padded[:batch, :out_features]


def _reference_forward(x, weights, matmul_dtype=jnp.float32):
    """Plain-JAX reference (no bias; BN cancels it) in PyTorch training mode."""
    out = x
    for w in weights:
        y = jnp.dot(out.astype(matmul_dtype), w.astype(matmul_dtype),
                    preferred_element_type=jnp.float32)
        mean = jnp.mean(y, axis=0, keepdims=True)
        var = jnp.mean((y - mean) ** 2, axis=0, keepdims=True)
        out = jnp.maximum((y - mean) / jnp.sqrt(var + BN_EPS), 0.0)
    return out


def _reference_forward_with_bias(x, weights, biases):
    """Reference matching the literal PyTorch graph (Linear bias included)."""
    out = x
    for w, b in zip(weights, biases):
        y = out @ w + b
        mean = jnp.mean(y, axis=0, keepdims=True)
        var = jnp.mean((y - mean) ** 2, axis=0, keepdims=True)
        out = jnp.maximum((y - mean) / jnp.sqrt(var + BN_EPS), 0.0)
    return out


if __name__ == "__main__":
    key = jax.random.PRNGKey(0)
    k_x, k_x2, k_x3, k_p = jax.random.split(key, 4)

    input_feature_num = 32
    deep_layer = [64, 32, 16]

    # ---- f32 path (exactness check at toy shapes) ----
    params = init_deepnet_params(k_p, input_feature_num, deep_layer,
                                 matmul_dtype=jnp.float32)

    batch = 8
    x = jax.random.normal(k_x, (batch, input_feature_num), jnp.float32)
    out = jax.block_until_ready(
        deepnet_forward(x, params["weights_padded"], out_features=deep_layer[-1]))
    assert out.shape == (batch, deep_layer[-1])

    ref = _reference_forward(x, params["weights"])
    assert jnp.allclose(out, ref, atol=1e-4, rtol=1e-4), "mismatch vs reference"

    # Bias-included reference (literal PyTorch graph): identical up to rounding,
    # confirming the bias elision is semantics-preserving.
    ref_b = _reference_forward_with_bias(x, params["weights"], params["biases"])
    assert jnp.allclose(out, ref_b, atol=1e-3, rtol=1e-3), "mismatch vs biased ref"

    # ---- batch-padding / row-masking path (batch not a multiple of 8) ----
    batch2 = 6
    x2 = jax.random.normal(k_x2, (batch2, input_feature_num), jnp.float32)
    out2 = jax.block_until_ready(
        deepnet_forward(x2, params["weights_padded"], out_features=deep_layer[-1]))
    ref2 = _reference_forward(x2, params["weights"])
    assert out2.shape == (batch2, deep_layer[-1])
    assert jnp.allclose(out2, ref2, atol=1e-4, rtol=1e-4), "mismatch (padded batch)"

    # ---- production-style path: larger batch (better MXU M utilization) with
    #      bf16 MXU operands and f32 BN math ----
    params_bf16 = init_deepnet_params(k_p, input_feature_num, deep_layer,
                                      matmul_dtype=jnp.bfloat16)
    batch3 = 128
    x3 = jax.random.normal(k_x3, (batch3, input_feature_num), jnp.float32)
    out3 = jax.block_until_ready(
        deepnet_forward(x3, params_bf16["weights_padded"],
                        out_features=deep_layer[-1]))
    ref3 = _reference_forward(x3, params_bf16["weights"],
                              matmul_dtype=jnp.bfloat16)
    assert out3.shape == (batch3, deep_layer[-1])
    assert jnp.allclose(out3, ref3, atol=2e-2, rtol=2e-2), "mismatch (bf16 path)"

    print("KERNEL_OK")
</pallas_src>

<mosaic_0001>
module attributes {stable_mosaic.version = 11 : i64} {
  func.func @kernel(%arg0: memref<8x128xf32, #tpu.memory_space<vmem>>, %arg1: memref<128x128xf32, #tpu.memory_space<vmem>>, %arg2: memref<128x128xf32, #tpu.memory_space<vmem>>, %arg3: memref<128x128xf32, #tpu.memory_space<vmem>>, %arg4: memref<8x128xf32, #tpu.memory_space<vmem>>) attributes {dimension_semantics = [], scalar_prefetch = 0 : i64, scratch_operands = 0 : i64, tpu.core_type = #tpu.core_type<tc>} {
    %c0 = arith.constant 0 : index
    %c0_0 = arith.constant 0 : index
    %0 = vector.load %arg0[%c0, %c0_0] : memref<8x128xf32, #tpu.memory_space<vmem>>, vector<8x128xf32>
    %c0_1 = arith.constant 0 : index
    %c0_2 = arith.constant 0 : index
    %1 = vector.load %arg1[%c0_1, %c0_2] : memref<128x128xf32, #tpu.memory_space<vmem>>, vector<128x128xf32>
    %cst = arith.constant dense<0.000000e+00> : vector<8x128xf32>
    %2 = tpu.matmul %0, %1, %cst {dimension_numbers = #tpu.dot_dimension_numbers<[1], [0], [0], [1], [0, 0, 1, 1], [], []>} : vector<8x128xf32>, vector<128x128xf32>, vector<8x128xf32> -> vector<8x128xf32>
    %cst_3 = arith.constant dense<0.000000e+00> : vector<128xf32>
    %3 = vector.multi_reduction <add>, %2, %cst_3 [0] : vector<8x128xf32> to vector<128xf32>
    %4 = vector.shape_cast %3 : vector<128xf32> to vector<1x128xf32>
    %5 = arith.mulf %2, %2 : vector<8x128xf32>
    %cst_4 = arith.constant dense<0.000000e+00> : vector<128xf32>
    %6 = vector.multi_reduction <add>, %5, %cst_4 [0] : vector<8x128xf32> to vector<128xf32>
    %7 = vector.shape_cast %6 : vector<128xf32> to vector<1x128xf32>
    %cst_5 = arith.constant 1.250000e-01 : f32
    %8 = vector.broadcast %cst_5 : f32 to vector<1x128xf32>
    %9 = arith.mulf %4, %8 : vector<1x128xf32>
    %cst_6 = arith.constant 1.250000e-01 : f32
    %10 = vector.broadcast %cst_6 : f32 to vector<1x128xf32>
    %11 = arith.mulf %7, %10 : vector<1x128xf32>
    %12 = arith.mulf %9, %9 : vector<1x128xf32>
    %13 = arith.subf %11, %12 : vector<1x128xf32>
    %cst_7 = arith.constant 0.000000e+00 : f32
    %14 = vector.broadcast %cst_7 : f32 to vector<1x128xf32>
    %15 = arith.maximumf %13, %14 : vector<1x128xf32>
    %16 = vector.broadcast %9 : vector<1x128xf32> to vector<8x128xf32>
    %17 = arith.subf %2, %16 : vector<8x128xf32>
    %cst_8 = arith.constant 9.99999974E-6 : f32
    %18 = vector.broadcast %cst_8 : f32 to vector<1x128xf32>
    %19 = arith.addf %15, %18 : vector<1x128xf32>
    %20 = math.rsqrt %19 : vector<1x128xf32>
    %21 = vector.broadcast %20 : vector<1x128xf32> to vector<8x128xf32>
    %22 = arith.mulf %17, %21 : vector<8x128xf32>
    %cst_9 = arith.constant 0.000000e+00 : f32
    %23 = vector.broadcast %cst_9 : f32 to vector<8x128xf32>
    %24 = arith.maximumf %22, %23 : vector<8x128xf32>
    %c0_10 = arith.constant 0 : index
    %c0_11 = arith.constant 0 : index
    %25 = vector.load %arg2[%c0_10, %c0_11] : memref<128x128xf32, #tpu.memory_space<vmem>>, vector<128x128xf32>
    %cst_12 = arith.constant dense<0.000000e+00> : vector<8x128xf32>
    %26 = tpu.matmul %24, %25, %cst_12 {dimension_numbers = #tpu.dot_dimension_numbers<[1], [0], [0], [1], [0, 0, 1, 1], [], []>} : vector<8x128xf32>, vector<128x128xf32>, vector<8x128xf32> -> vector<8x128xf32>
    %cst_13 = arith.constant dense<0.000000e+00> : vector<128xf32>
    %27 = vector.multi_reduction <add>, %26, %cst_13 [0] : vector<8x128xf32> to vector<128xf32>
    %28 = vector.shape_cast %27 : vector<128xf32> to vector<1x128xf32>
    %29 = arith.mulf %26, %26 : vector<8x128xf32>
    %cst_14 = arith.constant dense<0.000000e+00> : vector<128xf32>
    %30 = vector.multi_reduction <add>, %29, %cst_14 [0] : vector<8x128xf32> to vector<128xf32>
    %31 = vector.shape_cast %30 : vector<128xf32> to vector<1x128xf32>
    %cst_15 = arith.constant 1.250000e-01 : f32
    %32 = vector.broadcast %cst_15 : f32 to vector<1x128xf32>
    %33 = arith.mulf %28, %32 : vector<1x128xf32>
    %cst_16 = arith.constant 1.250000e-01 : f32
    %34 = vector.broadcast %cst_16 : f32 to vector<1x128xf32>
    %35 = arith.mulf %31, %34 : vector<1x128xf32>
    %36 = arith.mulf %33, %33 : vector<1x128xf32>
    %37 = arith.subf %35, %36 : vector<1x128xf32>
    %cst_17 = arith.constant 0.000000e+00 : f32
    %38 = vector.broadcast %cst_17 : f32 to vector<1x128xf32>
    %39 = arith.maximumf %37, %38 : vector<1x128xf32>
    %40 = vector.broadcast %33 : vector<1x128xf32> to vector<8x128xf32>
    %41 = arith.subf %26, %40 : vector<8x128xf32>
    %cst_18 = arith.constant 9.99999974E-6 : f32
    %42 = vector.broadcast %cst_18 : f32 to vector<1x128xf32>
    %43 = arith.addf %39, %42 : vector<1x128xf32>
    %44 = math.rsqrt %43 : vector<1x128xf32>
    %45 = vector.broadcast %44 : vector<1x128xf32> to vector<8x128xf32>
    %46 = arith.mulf %41, %45 : vector<8x128xf32>
    %cst_19 = arith.constant 0.000000e+00 : f32
    %47 = vector.broadcast %cst_19 : f32 to vector<8x128xf32>
    %48 = arith.maximumf %46, %47 : vector<8x128xf32>
    %c0_20 = arith.constant 0 : index
    %c0_21 = arith.constant 0 : index
    %49 = vector.load %arg3[%c0_20, %c0_21] : memref<128x128xf32, #tpu.memory_space<vmem>>, vector<128x128xf32>
    %cst_22 = arith.constant dense<0.000000e+00> : vector<8x128xf32>
    %50 = tpu.matmul %48, %49, %cst_22 {dimension_numbers = #tpu.dot_dimension_numbers<[1], [0], [0], [1], [0, 0, 1, 1], [], []>} : vector<8x128xf32>, vector<128x128xf32>, vector<8x128xf32> -> vector<8x128xf32>
    %cst_23 = arith.constant dense<0.000000e+00> : vector<128xf32>
    %51 = vector.multi_reduction <add>, %50, %cst_23 [0] : vector<8x128xf32> to vector<128xf32>
    %52 = vector.shape_cast %51 : vector<128xf32> to vector<1x128xf32>
    %53 = arith.mulf %50, %50 : vector<8x128xf32>
    %cst_24 = arith.constant dense<0.000000e+00> : vector<128xf32>
    %54 = vector.multi_reduction <add>, %53, %cst_24 [0] : vector<8x128xf32> to vector<128xf32>
    %55 = vector.shape_cast %54 : vector<128xf32> to vector<1x128xf32>
    %cst_25 = arith.constant 1.250000e-01 : f32
    %56 = vector.broadcast %cst_25 : f32 to vector<1x128xf32>
    %57 = arith.mulf %52, %56 : vector<1x128xf32>
    %cst_26 = arith.constant 1.250000e-01 : f32
    %58 = vector.broadcast %cst_26 : f32 to vector<1x128xf32>
    %59 = arith.mulf %55, %58 : vector<1x128xf32>
    %60 = arith.mulf %57, %57 : vector<1x128xf32>
    %61 = arith.subf %59, %60 : vector<1x128xf32>
    %cst_27 = arith.constant 0.000000e+00 : f32
    %62 = vector.broadcast %cst_27 : f32 to vector<1x128xf32>
    %63 = arith.maximumf %61, %62 : vector<1x128xf32>
    %64 = vector.broadcast %57 : vector<1x128xf32> to vector<8x128xf32>
    %65 = arith.subf %50, %64 : vector<8x128xf32>
    %cst_28 = arith.constant 9.99999974E-6 : f32
    %66 = vector.broadcast %cst_28 : f32 to vector<1x128xf32>
    %67 = arith.addf %63, %66 : vector<1x128xf32>
    %68 = math.rsqrt %67 : vector<1x128xf32>
    %69 = vector.broadcast %68 : vector<1x128xf32> to vector<8x128xf32>
    %70 = arith.mulf %65, %69 : vector<8x128xf32>
    %cst_29 = arith.constant 0.000000e+00 : f32
    %71 = vector.broadcast %cst_29 : f32 to vector<8x128xf32>
    %72 = arith.maximumf %70, %71 : vector<8x128xf32>
    %c0_30 = arith.constant 0 : index
    %c0_31 = arith.constant 0 : index
    %73 = vector.load %arg4[%c0_30, %c0_31] : memref<8x128xf32, #tpu.memory_space<vmem>>, vector<8x128xf32>
    tpu.vector_store %arg4[%c0_30, %c0_31], %72 {strides = array<i32>} : memref<8x128xf32, #tpu.memory_space<vmem>>, vector<8x128xf32>,
    return
  }
}

</mosaic_0001>

<llo_original>
// kernel: deepnet_forward.1
$region0: #{deepnet_forward.1}
  #allocation0 [shape = 'u32[]', space=smem, size = 0x4, offset = 0x4, fixed_abs, tag = 'smem constant byte address 0x4 - core index']
  #allocation1 [shape = 'u32[72,128]{1,0:T(1,128)}', space=vmem, size = 0x9000, scoped, tag = 'internal scratch']
  %s0 = inlined_call_operand.vmem [shape: f32[8,128], index: 0, kind: input, shape index: {}]
  %s1 = inlined_call_operand.hbm [shape: f32[128,128], index: 1, kind: input, shape index: {}]
  %s2 = inlined_call_operand.hbm [shape: f32[128,128], index: 2, kind: input, shape index: {}]
  %s3 = inlined_call_operand.hbm [shape: f32[128,128], index: 3, kind: input, shape index: {}]
  %s4 = inlined_call_operand.hbm [shape: f32[8,128], index: 4, kind: output, shape index: {}]
  %s5 = sld [smem:[#allocation0]]
  $region38: #{deepnet_forward.1} parent=0
    _
  %s7 = ssub.s32 1, %s5
  %s8 = scalar_select 0, %s7, %s5
  $region1: #{deepnet_forward.1} parent=0
    #allocation2 [shape = 'u8[65536]{0}', space=vmem, size = 0x10000, scoped, tag = 'input window, operand 1, single buffered']
    #allocation3 [shape = 's32[1]{0}', space=sflag, size = 0x4, scoped, tag = 'scoped memory for deepnet_forward.1']
    #allocation4 [shape = 's32[1]{0}', space=sflag, size = 0x4, scoped, tag = 'scoped memory for deepnet_forward.1']
    #allocation5 [shape = 'u8[65536]{0}', space=vmem, size = 0x10000, scoped, tag = 'input window, operand 2, single buffered']
    #allocation6 [shape = 's32[1]{0}', space=sflag, size = 0x4, scoped, tag = 'scoped memory for deepnet_forward.1']
    #allocation7 [shape = 'u8[65536]{0}', space=vmem, size = 0x10000, scoped, tag = 'input window, operand 3, single buffered']
    #allocation8 [shape = 'u8[4096]{0}', space=vmem, size = 0x1000, scoped, tag = 'output window, operand 0, single buffered']
    %9 = vsyncpa [#allocation3], 0
    %10 = vsyncpa [#allocation6], 0
    %11 = vsyncpa [#allocation4], 0
    // Predicated region
    $region2: #{deepnet_forward.1} parent=1 // pred_check
      _
    $region3: #{deepnet_forward.1} parent=1 // pred_check_branch
      %13 = sbr.rel (0) target = $region5
    $region4: #{deepnet_forward.1} parent=1 // pred_region
      _
    $region5: #{deepnet_forward.1} parent=1 // pred_fallthru
      _
    // Predicated region
    $region6: #{deepnet_forward.1} parent=1 // pred_check
      _
    $region7: #{deepnet_forward.1} parent=1 // pred_check_branch
      %15 = sbr.rel (0) target = $region9
    $region8: #{deepnet_forward.1} parent=1 // pred_region
      %17 = vsyncadd [#allocation3], 0
      %s18 = sshll.u32 %s1, 4
      %s19 = int_to_ptr.hbm [resolvable:$true] %s18
      %s20 = sshll.u32 [#allocation2], 4
      %s21 = int_to_ptr.vmem [resolvable:$true] %s20
      %26 = dma.hbm_to_vmem [thread:$0]  %s19, 2048, %s21, [#allocation3], 128, 128, 8
    $region9: #{deepnet_forward.1} parent=1 // pred_fallthru
      _
    // Predicated region
    $region10: #{deepnet_forward.1} parent=1 // pred_check
      _
    $region11: #{deepnet_forward.1} parent=1 // pred_check_branch
      %28 = sbr.rel (0) target = $region13
    $region12: #{deepnet_forward.1} parent=1 // pred_region
      %30 = vsyncadd [#allocation6], 0
      %s31 = sshll.u32 %s2, 4
      %s32 = int_to_ptr.hbm [resolvable:$true] %s31
      %s33 = sshll.u32 [#allocation5], 4
      %s34 = int_to_ptr.vmem [resolvable:$true] %s33
      %39 = dma.hbm_to_vmem [thread:$0]  %s32, 2048, %s34, [#allocation6], 128, 128, 8
    $region13: #{deepnet_forward.1} parent=1 // pred_fallthru
      _
    // Predicated region
    $region14: #{deepnet_forward.1} parent=1 // pred_check
      _
    $region15: #{deepnet_forward.1} parent=1 // pred_check_branch
      %41 = sbr.rel (0) target = $region17
    $region16: #{deepnet_forward.1} parent=1 // pred_region
      %43 = vsyncadd [#allocation6], 0
      %s44 = sshll.u32 %s3, 4
      %s45 = int_to_ptr.hbm [resolvable:$true] %s44
      %s46 = sshll.u32 [#allocation7], 4
      %s47 = int_to_ptr.vmem [resolvable:$true] %s46
      %52 = dma.hbm_to_vmem [thread:$0]  %s45, 2048, %s47, [#allocation6], 128, 128, 8
    $region17: #{deepnet_forward.1} parent=1 // pred_fallthru
      _
    // Predicated region
    $region18: #{deepnet_forward.1} parent=1 // pred_check
      _
    $region19: #{deepnet_forward.1} parent=1 // pred_check_branch
      %54 = sbr.rel (0) target = $region21
    $region20: #{deepnet_forward.1} parent=1 // pred_region
      %56 = dma.done [#allocation3], 2048
    $region21: #{deepnet_forward.1} parent=1 // pred_fallthru
      _
    // Predicated region
    $region22: #{deepnet_forward.1} parent=1 // pred_check
      _
    $region23: #{deepnet_forward.1} parent=1 // pred_check_branch
      %58 = sbr.rel (0) target = $region25
    $region24: #{deepnet_forward.1} parent=1 // pred_region
      %60 = dma.done [#allocation6], 2048
    $region25: #{deepnet_forward.1} parent=1 // pred_fallthru
      _
    // Predicated region
    $region26: #{deepnet_forward.1} parent=1 // pred_check
      _
    $region27: #{deepnet_forward.1} parent=1 // pred_check_branch
      %62 = sbr.rel (0) target = $region29
    $region28: #{deepnet_forward.1} parent=1 // pred_region
      %64 = dma.done [#allocation6], 2048
    $region29: #{deepnet_forward.1} parent=1 // pred_fallthru
      _
    %v65 = vld [vmem:[%s0] sm:$0xff]
    %v66 = vld [vmem:[#allocation2] sm:$0xff]
    %v67 = vld [vmem:[#allocation2 + $0x8] sm:$0xff]
    %v68 = vld [vmem:[#allocation2 + $0x10] sm:$0xff]
    %v69 = vld [vmem:[#allocation2 + $0x18] sm:$0xff]
    %v70 = vld [vmem:[#allocation2 + $0x20] sm:$0xff]
    %v71 = vld [vmem:[#allocation2 + $0x28] sm:$0xff]
    %v72 = vld [vmem:[#allocation2 + $0x30] sm:$0xff]
    %v73 = vld [vmem:[#allocation2 + $0x38] sm:$0xff]
    %v74 = vld [vmem:[#allocation2 + $0x40] sm:$0xff]
    %v75 = vld [vmem:[#allocation2 + $0x48] sm:$0xff]
    %v76 = vld [vmem:[#allocation2 + $0x50] sm:$0xff]
    %v77 = vld [vmem:[#allocation2 + $0x58] sm:$0xff]
    %v78 = vld [vmem:[#allocation2 + $0x60] sm:$0xff]
    %v79 = vld [vmem:[#allocation2 + $0x68] sm:$0xff]
    %v80 = vld [vmem:[#allocation2 + $0x70] sm:$0xff]
    %v81 = vld [vmem:[#allocation2 + $0x78] sm:$0xff]
    %82 = vmatpush.msra.mxu0 %v81
    %83 = vmatpush.msra.mxu0 %v80
    %84 = vmatpush.msra.mxu0 %v79
    %85 = vmatpush.msra.mxu0 %v78
    %86 = vmatpush.msra.mxu0 %v77
    %87 = vmatpush.msra.mxu0 %v76
    %88 = vmatpush.msra.mxu0 %v75
    %89 = vmatpush.msra.mxu0 %v74
    %90 = vmatpush.msra.mxu0 %v73
    %91 = vmatpush.msra.mxu0 %v72
    %92 = vmatpush.msra.mxu0 %v71
    %93 = vmatpush.msra.mxu0 %v70
    %94 = vmatpush.msra.mxu0 %v69
    %95 = vmatpush.msra.mxu0 %v68
    %96 = vmatpush.msra.mxu0 %v67
    %97 = vmatpush.msra.mxu0 %v66
    %98 = vmatmul.f32.gmra.mxu0 %v65
    %v99 = vpop.f32.mrf.mxu0
    %v100 = vadd.f32 0.0, %v99
    %101 = vdwg.mxu0
    %v102 = vrot.slane %v100, 4
    %v103 = vadd.f32 %v100, %v102
    %v104 = vrot.slane %v103, 2
    %v105 = vadd.f32 %v103, %v104
    %v106 = vrot.slane %v105, 1
    %v107 = vadd.f32 %v105, %v106
    %v108 = vmul.f32 %v100, %v100
    %v109 = vrot.slane %v108, 4
    %v110 = vadd.f32 %v108, %v109
    %v111 = vrot.slane %v110, 2
    %v112 = vadd.f32 %v110, %v111
    %v113 = vrot.slane %v112, 1
    %v114 = vadd.f32 %v112, %v113
    %v115 = vmul.f32 %v107, 0.125
    %v116 = vmul.f32 %v114, 0.125
    %v117 = vmul.f32 %v115, %v115
    %v118 = vsub.f32 %v116, %v117
    %v119 = vmax.f32 %v118, 0.0
    %v120 = vsub.f32 %v100, %v115
    %v121 = vadd.f32 %v119, 1e-05
    %v122 = vrsqrt.pop %v121
    %v123 = vmul.f32 %v122, %v121
    %v124 = vmul.f32 %v123, %v122
    %v125 = vmul.f32 0.5, %v124
    %v126 = vsub.f32 1.5, %v125
    %v127 = vmul.f32 %v122, %v126
    %vm128 = vweird.f32 %v121
    %vm129 = vweird.f32 %v122
    %vm130 = vmor %vm128, %vm129
    %v131 = vsel %vm130, %v122, %v127
    %v132 = vmul.f32 %v120, %v131
    %v133 = vmax.f32 %v132, 0.0
    %v134 = vld [vmem:[#allocation5] sm:$0xff]
    %v135 = vld [vmem:[#allocation5 + $0x8] sm:$0xff]
    %v136 = vld [vmem:[#allocation5 + $0x10] sm:$0xff]
    %v137 = vld [vmem:[#allocation5 + $0x18] sm:$0xff]
    %v138 = vld [vmem:[#allocation5 + $0x20] sm:$0xff]
    %v139 = vld [vmem:[#allocation5 + $0x28] sm:$0xff]
    %v140 = vld [vmem:[#allocation5 + $0x30] sm:$0xff]
    %v141 = vld [vmem:[#allocation5 + $0x38] sm:$0xff]
    %v142 = vld [vmem:[#allocation5 + $0x40] sm:$0xff]
    %v143 = vld [vmem:[#allocation5 + $0x48] sm:$0xff]
    %v144 = vld [vmem:[#allocation5 + $0x50] sm:$0xff]
    %v145 = vld [vmem:[#allocation5 + $0x58] sm:$0xff]
    %v146 = vld [vmem:[#allocation5 + $0x60] sm:$0xff]
    %v147 = vld [vmem:[#allocation5 + $0x68] sm:$0xff]
    %v148 = vld [vmem:[#allocation5 + $0x70] sm:$0xff]
    %v149 = vld [vmem:[#allocation5 + $0x78] sm:$0xff]
    %150 = vmatpush.msra.mxu0 %v149
    %151 = vmatpush.msra.mxu0 %v148
    %152 = vmatpush.msra.mxu0 %v147
    %153 = vmatpush.msra.mxu0 %v146
    %154 = vmatpush.msra.mxu0 %v145
    %155 = vmatpush.msra.mxu0 %v144
    %156 = vmatpush.msra.mxu0 %v143
    %157 = vmatpush.msra.mxu0 %v142
    %158 = vmatpush.msra.mxu0 %v141
    %159 = vmatpush.msra.mxu0 %v140
    %160 = vmatpush.msra.mxu0 %v139
    %161 = vmatpush.msra.mxu0 %v138
    %162 = vmatpush.msra.mxu0 %v137
    %163 = vmatpush.msra.mxu0 %v136
    %164 = vmatpush.msra.mxu0 %v135
    %165 = vmatpush.msra.mxu0 %v134
    %166 = vmatmul.f32.gmra.mxu0 %v133
    %v167 = vpop.f32.mrf.mxu0
    %v168 = vadd.f32 0.0, %v167
    %169 = vdwg.mxu0
    %v170 = vrot.slane %v168, 4
    %v171 = vadd.f32 %v168, %v170
    %v172 = vrot.slane %v171, 2
    %v173 = vadd.f32 %v171, %v172
    %v174 = vrot.slane %v173, 1
    %v175 = vadd.f32 %v173, %v174
    %v176 = vmul.f32 %v168, %v168
    %v177 = vrot.slane %v176, 4
    %v178 = vadd.f32 %v176, %v177
    %v179 = vrot.slane %v178, 2
    %v180 = vadd.f32 %v178, %v179
    %v181 = vrot.slane %v180, 1
    %v182 = vadd.f32 %v180, %v181
    %v183 = vmul.f32 %v175, 0.125
    %v184 = vmul.f32 %v182, 0.125
    %v185 = vmul.f32 %v183, %v183
    %v186 = vsub.f32 %v184, %v185
    %v187 = vmax.f32 %v186, 0.0
    %v188 = vsub.f32 %v168, %v183
    %v189 = vadd.f32 %v187, 1e-05
    %v190 = vrsqrt.pop %v189
    %v191 = vmul.f32 %v190, %v189
    %v192 = vmul.f32 %v191, %v190
    %v193 = vmul.f32 0.5, %v192
    %v194 = vsub.f32 1.5, %v193
    %v195 = vmul.f32 %v190, %v194
    %vm196 = vweird.f32 %v189
    %vm197 = vweird.f32 %v190
    %vm198 = vmor %vm196, %vm197
    %v199 = vsel %vm198, %v190, %v195
    %v200 = vmul.f32 %v188, %v199
    %v201 = vmax.f32 %v200, 0.0
    %v202 = vld [vmem:[#allocation7] sm:$0xff]
    %v203 = vld [vmem:[#allocation7 + $0x8] sm:$0xff]
    %v204 = vld [vmem:[#allocation7 + $0x10] sm:$0xff]
    %v205 = vld [vmem:[#allocation7 + $0x18] sm:$0xff]
    %v206 = vld [vmem:[#allocation7 + $0x20] sm:$0xff]
    %v207 = vld [vmem:[#allocation7 + $0x28] sm:$0xff]
    %v208 = vld [vmem:[#allocation7 + $0x30] sm:$0xff]
    %v209 = vld [vmem:[#allocation7 + $0x38] sm:$0xff]
    %v210 = vld [vmem:[#allocation7 + $0x40] sm:$0xff]
    %v211 = vld [vmem:[#allocation7 + $0x48] sm:$0xff]
    %v212 = vld [vmem:[#allocation7 + $0x50] sm:$0xff]
    %v213 = vld [vmem:[#allocation7 + $0x58] sm:$0xff]
    %v214 = vld [vmem:[#allocation7 + $0x60] sm:$0xff]
    %v215 = vld [vmem:[#allocation7 + $0x68] sm:$0xff]
    %v216 = vld [vmem:[#allocation7 + $0x70] sm:$0xff]
    %v217 = vld [vmem:[#allocation7 + $0x78] sm:$0xff]
    %218 = vmatpush.msra.mxu0 %v217
    %219 = vmatpush.msra.mxu0 %v216
    %220 = vmatpush.msra.mxu0 %v215
    %221 = vmatpush.msra.mxu0 %v214
    %222 = vmatpush.msra.mxu0 %v213
    %223 = vmatpush.msra.mxu0 %v212
    %224 = vmatpush.msra.mxu0 %v211
    %225 = vmatpush.msra.mxu0 %v210
    %226 = vmatpush.msra.mxu0 %v209
    %227 = vmatpush.msra.mxu0 %v208
    %228 = vmatpush.msra.mxu0 %v207
    %229 = vmatpush.msra.mxu0 %v206
    %230 = vmatpush.msra.mxu0 %v205
    %231 = vmatpush.msra.mxu0 %v204
    %232 = vmatpush.msra.mxu0 %v203
    %233 = vmatpush.msra.mxu0 %v202
    %234 = vmatmul.f32.gmra.mxu0 %v201
    %v235 = vpop.f32.mrf.mxu0
    %v236 = vadd.f32 0.0, %v235
    %237 = vdwg.mxu0
    %v238 = vrot.slane %v236, 4
    %v239 = vadd.f32 %v236, %v238
    %v240 = vrot.slane %v239, 2
    %v241 = vadd.f32 %v239, %v240
    %v242 = vrot.slane %v241, 1
    %v243 = vadd.f32 %v241, %v242
    %v244 = vmul.f32 %v236, %v236
    %v245 = vrot.slane %v244, 4
    %v246 = vadd.f32 %v244, %v245
    %v247 = vrot.slane %v246, 2
    %v248 = vadd.f32 %v246, %v247
    %v249 = vrot.slane %v248, 1
    %v250 = vadd.f32 %v248, %v249
    %v251 = vmul.f32 %v243, 0.125
    %v252 = vmul.f32 %v250, 0.125
    %v253 = vmul.f32 %v251, %v251
    %v254 = vsub.f32 %v252, %v253
    %v255 = vmax.f32 %v254, 0.0
    %v256 = vsub.f32 %v236, %v251
    %v257 = vadd.f32 %v255, 1e-05
    %v258 = vrsqrt.pop %v257
    %v259 = vmul.f32 %v258, %v257
    %v260 = vmul.f32 %v259, %v258
    %v261 = vmul.f32 0.5, %v260
    %v262 = vsub.f32 1.5, %v261
    %v263 = vmul.f32 %v258, %v262
    %vm264 = vweird.f32 %v257
    %vm265 = vweird.f32 %v258
    %vm266 = vmor %vm264, %vm265
    %v267 = vsel %vm266, %v258, %v263
    %v268 = vmul.f32 %v256, %v267
    %v269 = vmax.f32 %v268, 0.0
    %270 = vst [vmem:[#allocation8] sm:$0xff] %v269
    // Predicated region
    $region30: #{deepnet_forward.1} parent=1 // pred_check
      _
    $region31: #{deepnet_forward.1} parent=1 // pred_check_branch
      %272 = sbr.rel (0) target = $region33
    $region32: #{deepnet_forward.1} parent=1 // pred_region
      %274 = vsyncadd [#allocation4], 0
      %s276 = sshll.u32 [#allocation8], 4
      %s277 = int_to_ptr.vmem [resolvable:$true] %s276
      %s278 = sshll.u32 %s4, 4
      %s279 = int_to_ptr.hbm [resolvable:$true] %s278
      %281 = dma.vmem_to_hbm [thread:$0]  %s277, 128, %s279, [#allocation4]
    $region33: #{deepnet_forward.1} parent=1 // pred_fallthru
      _
    // Predicated region
    $region34: #{deepnet_forward.1} parent=1 // pred_check
      _
    $region35: #{deepnet_forward.1} parent=1 // pred_check_branch
      %283 = sbr.rel (0) target = $region37
    $region36: #{deepnet_forward.1} parent=1 // pred_region
      %285 = dma.done [#allocation4], 128
    $region37: #{deepnet_forward.1} parent=1 // pred_fallthru
      _
    %286 = vsyncpa [#allocation3], 1
    %287 = vsyncpa [#allocation6], 1
    %288 = vsyncpa [#allocation4], 1

</llo_original>
